<compile_context>
chip_gen: v5e
topology: v5e:2x2
jax: 0.10.0
libtpu: 0.0.40
codegen_flags: <defaults>
</compile_context>

<pallas_src>
import math

import jax
import jax.numpy as jnp
from jax.experimental import pallas as pl
from jax.experimental.pallas import tpu as pltpu


# ---------------------------------------------------------------------------
# Kernel bodies
# ---------------------------------------------------------------------------
def _activate(p):
    """sigmoid everywhere; exp only on the leading <=8 (sublane-aligned) rows
    that contain the w/h channels (rows 2,3).  Select happens before any
    multiply/add so exp overflow in discarded rows stays benign."""
    a, c5, t = p.shape
    h = min(c5, 8)
    sig = jax.nn.sigmoid(p)                                   # EUP, whole tile
    head = p[:, :h, :]
    row = jax.lax.broadcasted_iota(jnp.int32, head.shape, 1)
    head_out = jnp.where((row == 2) | (row == 3), jnp.exp(head), sig[:, :h, :])
    if c5 > h:
        return jnp.concatenate([head_out, sig[:, h:, :]], axis=1)
    return head_out


def _yolo_kernel_packed(pred_ref, scale_ref, add_ref, out_ref):
    # pred_ref : (1, A, C5, T)       native dtype (f32 / bf16)
    # scale_ref: (A, C5, 1)          f32 per-anchor/channel multiplier
    # add_ref  : (1, C5, T)          f32 per-channel additive offset (grid*stride)
    # out_ref  : (1, A, T//k, k*C5)  lane-dense packed rows (k*C5 % 128 == 0)
    p = pred_ref[0].astype(jnp.float32)                       # (A, C5, T)
    y = _activate(p) * scale_ref[...] + add_ref[...]          # fused scale+offset
    y = jnp.transpose(y, (0, 2, 1))                           # (A, T, C5)  (XLU)
    out_ref[0] = jnp.reshape(y, out_ref.shape[1:]).astype(out_ref.dtype)


def _yolo_kernel_plain(pred_ref, scale_ref, add_ref, out_ref):
    # Fallback layout: out_ref (1, A, T, C5).  Identical HBM bytes, but the
    # lane dim is C5 (<128) -> masked stores.  Used when packing is impossible
    # or its in-kernel re-pack does not lower.
    p = pred_ref[0].astype(jnp.float32)
    y = _activate(p) * scale_ref[...] + add_ref[...]
    out_ref[0] = jnp.transpose(y, (0, 2, 1)).astype(out_ref.dtype)


# ---------------------------------------------------------------------------
# Wrapper
# ---------------------------------------------------------------------------
_PACKED_STATUS = {"ok": None}   # None = untried, True/False after first attempt


def _pick_gg_tile(gg, per_lane_bytes, n_batch):
    """Lane tile along GG: a 128-multiple divisor, sized for the mem-bound
    sweet spot (~<=2 MiB per step) but small enough to give >=4 grid steps
    when the batch is tiny (DMA/compute overlap + both v7x TensorCores)."""
    divs = sorted(t for t in range(128, gg + 1, 128) if gg % t == 0)
    if not divs:
        return gg                                  # e.g. GG=169 -> full extent
    fitting = [t for t in divs if t * per_lane_bytes <= (2 << 20)] or divs[:1]
    tile = fitting[-1]
    for cand in reversed(fitting):                 # largest tile w/ >=4 steps
        if n_batch * (gg // cand) >= 4:
            tile = cand
            break
    return tile


def _build_tables(anchors, num_classes, G, stride):
    A = anchors.shape[0]
    C5 = num_classes + 5
    GG = G * G
    # Multiplicative per-(anchor, channel) scale.  (anchor/stride)*stride==anchor.
    scale_tab = jnp.concatenate(
        [jnp.full((A, 2), stride, jnp.float32),           # x, y rows
         anchors.astype(jnp.float32),                     # w, h rows
         jnp.ones((A, num_classes + 1), jnp.float32)],    # conf + classes
        axis=1).reshape(A, C5, 1)
    # Additive per-channel offset, already multiplied by stride.
    gx = jnp.tile(jnp.arange(G, dtype=jnp.float32), G) * stride
    gy = jnp.repeat(jnp.arange(G, dtype=jnp.float32), G) * stride
    add_tab = jnp.concatenate(
        [gx.reshape(1, GG), gy.reshape(1, GG),
         jnp.zeros((C5 - 2, GG), jnp.float32)], axis=0).reshape(1, C5, GG)
    return scale_tab, add_tab


def yolo_layer_forward(x_nchw, anchors, num_classes, img_dim,
                       out_dtype=jnp.float32):
    """Inference forward of YOLOLayer (targets=None).  Returns (output, 0)."""
    N, C_in, G, G2 = x_nchw.shape
    assert G == G2
    A = int(anchors.shape[0])
    C5 = num_classes + 5
    assert C_in == A * C5
    GG = G * G
    stride = float(img_dim) / float(G)

    pred = x_nchw.reshape(N, A, C5, GG)            # pure view, native dtype
    scale_tab, add_tab = _build_tables(anchors, num_classes, G, stride)

    in_itemsize = jnp.dtype(x_nchw.dtype).itemsize
    out_itemsize = jnp.dtype(out_dtype).itemsize
    T = _pick_gg_tile(GG, A * C5 * (in_itemsize + out_itemsize), N)
    n_t = pl.cdiv(GG, T)

    # Lane-dense packing parameters.
    W = (C5 * 128) // math.gcd(C5, 128)            # packed row width (mult of 128)
    k = W // C5                                    # grid cells per packed row
    can_pack = (GG % T == 0 and T % k == 0 and W <= 1024 and
                ((T // k) % 8 == 0 or T == GG // k * k and T == GG))

    cost = pl.CostEstimate(
        flops=2 * N * A * C5 * GG,
        transcendentals=N * A * GG * (C5 + min(C5, 8)),
        bytes_accessed=int(pred.size) * in_itemsize
                       + N * A * GG * C5 * out_itemsize
                       + int(scale_tab.size) * 4 + int(add_tab.size) * 4)

    # VMEM budget: double-buffered in/out tiles (incl. lane padding on the
    # plain path) with headroom; fits v7x's 64 MiB VMEM.
    step_bytes = (A * C5 * T * in_itemsize
                  + A * T * max(C5, 128) * out_itemsize
                  + C5 * T * 4)
    vmem_limit = int(min(max(4 * step_bytes, 16 << 20), 48 << 20))

    cparams = pltpu.CompilerParams(
        dimension_semantics=("parallel", "parallel"),
        vmem_limit_bytes=vmem_limit)

    in_specs = [
        pl.BlockSpec((1, A, C5, T), lambda n, t: (n, 0, 0, t)),
        pl.BlockSpec((A, C5, 1), lambda n, t: (0, 0, 0)),
        pl.BlockSpec((1, C5, T), lambda n, t: (0, 0, t)),
    ]

    def run(kernel, out_shape, out_spec):
        return pl.pallas_call(
            kernel,
            out_shape=out_shape,
            grid_spec=pltpu.PrefetchScalarGridSpec(
                num_scalar_prefetch=0,
                grid=(N, n_t),
                in_specs=in_specs,
                out_specs=out_spec),
            compiler_params=cparams,
            cost_estimate=cost,
        )(pred, scale_tab, add_tab)

    if can_pack and _PACKED_STATUS["ok"] is not False:
        try:
            out = run(
                _yolo_kernel_packed,
                jax.ShapeDtypeStruct((N, A, GG // k, W), out_dtype),
                pl.BlockSpec((1, A, T // k, W), lambda n, t: (n, 0, t, 0)))
            if _PACKED_STATUS["ok"] is None:
                jax.block_until_ready(out)     # force compile on first use
                _PACKED_STATUS["ok"] = True
            return out.reshape(N, A * GG, C5), 0
        except Exception:
            _PACKED_STATUS["ok"] = False       # Mosaic rejected the re-pack

    out = run(
        _yolo_kernel_plain,
        jax.ShapeDtypeStruct((N, A, GG, C5), out_dtype),
        pl.BlockSpec((1, A, T, C5), lambda n, t: (n, 0, t, 0)))
    # TODO(synk): training branch (build_targets + MSE/BCE losses) omitted;
    # build_targets is not defined in the reference module.
    return out.reshape(N, A * GG, C5), 0


# ---------------------------------------------------------------------------
# Pure-JAX reference (mirrors the PyTorch forward, targets=None)
# ---------------------------------------------------------------------------
def _reference_forward(x_nchw, anchors, num_classes, img_dim):
    N, _, G, _ = x_nchw.shape
    A = anchors.shape[0]
    stride = float(img_dim) / float(G)

    pred = jnp.transpose(
        x_nchw.reshape(N, A, num_classes + 5, G, G), (0, 1, 3, 4, 2)
    ).astype(jnp.float32)
    sx = jax.nn.sigmoid(pred[..., 0])
    sy = jax.nn.sigmoid(pred[..., 1])
    w = pred[..., 2]
    h = pred[..., 3]
    conf = jax.nn.sigmoid(pred[..., 4])
    cls = jax.nn.sigmoid(pred[..., 5:])

    grid_x = jnp.tile(jnp.arange(G, dtype=jnp.float32), (G, 1)).reshape(1, 1, G, G)
    grid_y = jnp.tile(jnp.arange(G, dtype=jnp.float32), (G, 1)).T.reshape(1, 1, G, G)
    sa = anchors.astype(jnp.float32) / stride
    aw = sa[:, 0].reshape(1, A, 1, 1)
    ah = sa[:, 1].reshape(1, A, 1, 1)

    boxes = jnp.stack(
        [sx + grid_x, sy + grid_y, jnp.exp(w) * aw, jnp.exp(h) * ah], axis=-1)
    out = jnp.concatenate(
        [boxes.reshape(N, -1, 4) * stride,
         conf.reshape(N, -1, 1),
         cls.reshape(N, -1, num_classes)], axis=-1)
    return out


if __name__ == "__main__":
    # 3 anchors, 3 classes -> C5=8 channels/anchor, 16x16 grid, batch 2.
    anchors = jnp.array([[10.0, 13.0], [16.0, 30.0], [33.0, 23.0]],
                        dtype=jnp.float32)
    num_classes = 3
    img_dim = 416
    N, G = 2, 16
    A = anchors.shape[0]
    C5 = num_classes + 5

    key = jax.random.PRNGKey(0)
    x = jax.random.normal(key, (N, A * C5, G, G), dtype=jnp.float32)

    # f32 input, f32 output (matches the PyTorch module).
    out, loss = yolo_layer_forward(x, anchors, num_classes, img_dim)
    out = jax.block_until_ready(out)
    ref = jax.block_until_ready(_reference_forward(x, anchors, num_classes, img_dim))
    assert out.shape == (N, A * G * G, C5), out.shape
    assert loss == 0
    assert jnp.allclose(out, ref, rtol=1e-5, atol=1e-5), (
        float(jnp.max(jnp.abs(out - ref))))

    # bf16 input (native-dtype DMA, in-kernel upcast + f32 transcendentals).
    x_bf = x.astype(jnp.bfloat16)
    out_bf, _ = yolo_layer_forward(x_bf, anchors, num_classes, img_dim)
    out_bf = jax.block_until_ready(out_bf)
    ref_bf = _reference_forward(x_bf, anchors, num_classes, img_dim)
    assert jnp.allclose(out_bf, ref_bf, rtol=1e-5, atol=1e-4), (
        float(jnp.max(jnp.abs(out_bf - ref_bf))))

    # Reduced-precision output option (halves output HBM traffic).
    out_lo, _ = yolo_layer_forward(x, anchors, num_classes, img_dim,
                                   out_dtype=jnp.bfloat16)
    out_lo = jax.block_until_ready(out_lo)
    assert out_lo.dtype == jnp.bfloat16
    assert jnp.allclose(out_lo.astype(jnp.float32), ref, rtol=2e-2, atol=2e-2)

    print("KERNEL_OK")
</pallas_src>

<mosaic_0001>
module attributes {stable_mosaic.version = 11 : i64} {
  func.func @_yolo_kernel_packed(%arg0: i32, %arg1: i32, %arg2: memref<1x3x8x128xf32, #tpu.memory_space<vmem>>, %arg3: memref<3x8x1xf32, #tpu.memory_space<vmem>>, %arg4: memref<1x8x128xf32, #tpu.memory_space<vmem>>, %arg5: memref<1x3x8x128xf32, #tpu.memory_space<vmem>>) attributes {dimension_semantics = [#tpu.dimension_semantics<parallel>, #tpu.dimension_semantics<parallel>], iteration_bounds = array<i64: 2, 2>, scalar_prefetch = 0 : i64, scratch_operands = 0 : i64, tpu.core_type = #tpu.core_type<tc>, window_params = [{transform_indices = @transform_0, window_bounds = array<i64: 1, 3, 8, 128>}, {pipeline_mode = #tpu.pipeline_mode<synchronous>, transform_indices = @transform_1, window_bounds = array<i64: 3, 8, 1>}, {transform_indices = @transform_2, window_bounds = array<i64: 1, 8, 128>}, {transform_indices = @transform_3, window_bounds = array<i64: 1, 3, 8, 128>}]} {
    %c0 = arith.constant 0 : index
    %c0_0 = arith.constant 0 : index
    %c0_1 = arith.constant 0 : index
    %c0_2 = arith.constant 0 : index
    %0 = vector.load %arg2[%c0, %c0_0, %c0_1, %c0_2] : memref<1x3x8x128xf32, #tpu.memory_space<vmem>>, vector<1x3x8x128xf32>
    %1 = vector.shape_cast %0 : vector<1x3x8x128xf32> to vector<3x8x128xf32>
    %2 = arith.negf %1 : vector<3x8x128xf32>
    %3 = math.exp %2 : vector<3x8x128xf32>
    %cst = arith.constant 1.000000e+00 : f32
    %4 = vector.broadcast %cst : f32 to vector<3x8x128xf32>
    %5 = arith.addf %4, %3 : vector<3x8x128xf32>
    %6 = arith.divf %4, %5 : vector<3x8x128xf32>
    %7 = tpu.iota {dimensions = array<i32: 1>} : vector<3x8x128xi32>
    %c2_i32 = arith.constant 2 : i32
    %8 = vector.broadcast %c2_i32 : i32 to vector<3x8x128xi32>
    %9 = arith.cmpi eq, %7, %8 : vector<3x8x128xi32>
    %c3_i32 = arith.constant 3 : i32
    %10 = vector.broadcast %c3_i32 : i32 to vector<3x8x128xi32>
    %11 = arith.cmpi eq, %7, %10 : vector<3x8x128xi32>
    %12 = arith.ori %9, %11 : vector<3x8x128xi1>
    %13 = math.exp %1 : vector<3x8x128xf32>
    %14 = arith.select %12, %13, %6 : vector<3x8x128xi1>, vector<3x8x128xf32>
    %c0_3 = arith.constant 0 : index
    %c0_4 = arith.constant 0 : index
    %c0_5 = arith.constant 0 : index
    %15 = vector.load %arg3[%c0_3, %c0_4, %c0_5] : memref<3x8x1xf32, #tpu.memory_space<vmem>>, vector<3x8x1xf32>
    %16 = vector.broadcast %15 : vector<3x8x1xf32> to vector<3x8x128xf32>
    %17 = arith.mulf %14, %16 : vector<3x8x128xf32>
    %c0_6 = arith.constant 0 : index
    %c0_7 = arith.constant 0 : index
    %c0_8 = arith.constant 0 : index
    %18 = vector.load %arg4[%c0_6, %c0_7, %c0_8] : memref<1x8x128xf32, #tpu.memory_space<vmem>>, vector<1x8x128xf32>
    %19 = vector.broadcast %18 : vector<1x8x128xf32> to vector<3x8x128xf32>
    %20 = arith.addf %17, %19 : vector<3x8x128xf32>
    %21 = tpu.transpose %20, [0, 2, 1] : vector<3x8x128xf32> -> vector<3x128x8xf32>
    %22 = vector.shape_cast %21 : vector<3x128x8xf32> to vector<3x8x128xf32>
    %c0_9 = arith.constant 0 : index
    %c0_10 = arith.constant 0 : index
    %c0_11 = arith.constant 0 : index
    %c0_12 = arith.constant 0 : index
    %23 = vector.load %arg5[%c0_9, %c0_10, %c0_11, %c0_12] : memref<1x3x8x128xf32, #tpu.memory_space<vmem>>, vector<1x3x8x128xf32>
    %24 = vector.shape_cast %23 : vector<1x3x8x128xf32> to vector<3x8x128xf32>
    %25 = vector.shape_cast %22 : vector<3x8x128xf32> to vector<1x3x8x128xf32>
    tpu.vector_store %arg5[%c0_9, %c0_10, %c0_11, %c0_12], %25 {strides = array<i32>} : memref<1x3x8x128xf32, #tpu.memory_space<vmem>>, vector<1x3x8x128xf32>,
    return
  }
  func.func @transform_0(%arg0: i32, %arg1: i32) -> (i32, i32, i32, i32) {
    %c0_i32 = arith.constant 0 : i32
    %c0_i32_0 = arith.constant 0 : i32
    %c0_i32_1 = arith.constant 0 : i32
    return %arg0, %c0_i32, %c0_i32_0, %arg1 : i32, i32, i32, i32
  }
  func.func @transform_1(%arg0: i32, %arg1: i32) -> (i32, i32, i32) {
    %c0_i32 = arith.constant 0 : i32
    %c0_i32_0 = arith.constant 0 : i32
    %c0_i32_1 = arith.constant 0 : i32
    %c0_i32_2 = arith.constant 0 : i32
    return %c0_i32, %c0_i32_0, %c0_i32_1 : i32, i32, i32
  }
  func.func @transform_2(%arg0: i32, %arg1: i32) -> (i32, i32, i32) {
    %c0_i32 = arith.constant 0 : i32
    %c0_i32_0 = arith.constant 0 : i32
    %c0_i32_1 = arith.constant 0 : i32
    return %c0_i32, %c0_i32_0, %arg1 : i32, i32, i32
  }
  func.func @transform_3(%arg0: i32, %arg1: i32) -> (i32, i32, i32, i32) {
    %c0_i32 = arith.constant 0 : i32
    %c0_i32_0 = arith.constant 0 : i32
    %c0_i32_1 = arith.constant 0 : i32
    return %arg0, %c0_i32, %arg1, %c0_i32_0 : i32, i32, i32, i32
  }
}

module attributes {stable_mosaic.version = 11 : i64} {
  func.func @_yolo_kernel_plain(%arg0: i32, %arg1: i32, %arg2: memref<1x3x8x128xf32, #tpu.memory_space<vmem>>, %arg3: memref<3x8x1xf32, #tpu.memory_space<vmem>>, %arg4: memref<1x8x128xf32, #tpu.memory_space<vmem>>, %arg5: memref<1x3x128x8xf32, #tpu.memory_space<vmem>>) attributes {dimension_semantics = [#tpu.dimension_semantics<parallel>, #tpu.dimension_semantics<parallel>], iteration_bounds = array<i64: 2, 2>, scalar_prefetch = 0 : i64, scratch_operands = 0 : i64, tpu.core_type = #tpu.core_type<tc>, window_params = [{transform_indices = @transform_0, window_bounds = array<i64: 1, 3, 8, 128>}, {pipeline_mode = #tpu.pipeline_mode<synchronous>, transform_indices = @transform_1, window_bounds = array<i64: 3, 8, 1>}, {transform_indices = @transform_2, window_bounds = array<i64: 1, 8, 128>}, {transform_indices = @transform_3, window_bounds = array<i64: 1, 3, 128, 8>}]} {
    %c0 = arith.constant 0 : index
    %c0_0 = arith.constant 0 : index
    %c0_1 = arith.constant 0 : index
    %c0_2 = arith.constant 0 : index
    %0 = vector.load %arg2[%c0, %c0_0, %c0_1, %c0_2] : memref<1x3x8x128xf32, #tpu.memory_space<vmem>>, vector<1x3x8x128xf32>
    %1 = vector.shape_cast %0 : vector<1x3x8x128xf32> to vector<3x8x128xf32>
    %2 = arith.negf %1 : vector<3x8x128xf32>
    %3 = math.exp %2 : vector<3x8x128xf32>
    %cst = arith.constant 1.000000e+00 : f32
    %4 = vector.broadcast %cst : f32 to vector<3x8x128xf32>
    %5 = arith.addf %4, %3 : vector<3x8x128xf32>
    %6 = arith.divf %4, %5 : vector<3x8x128xf32>
    %7 = tpu.iota {dimensions = array<i32: 1>} : vector<3x8x128xi32>
    %c2_i32 = arith.constant 2 : i32
    %8 = vector.broadcast %c2_i32 : i32 to vector<3x8x128xi32>
    %9 = arith.cmpi eq, %7, %8 : vector<3x8x128xi32>
    %c3_i32 = arith.constant 3 : i32
    %10 = vector.broadcast %c3_i32 : i32 to vector<3x8x128xi32>
    %11 = arith.cmpi eq, %7, %10 : vector<3x8x128xi32>
    %12 = arith.ori %9, %11 : vector<3x8x128xi1>
    %13 = math.exp %1 : vector<3x8x128xf32>
    %14 = arith.select %12, %13, %6 : vector<3x8x128xi1>, vector<3x8x128xf32>
    %c0_3 = arith.constant 0 : index
    %c0_4 = arith.constant 0 : index
    %c0_5 = arith.constant 0 : index
    %15 = vector.load %arg3[%c0_3, %c0_4, %c0_5] : memref<3x8x1xf32, #tpu.memory_space<vmem>>, vector<3x8x1xf32>
    %16 = vector.broadcast %15 : vector<3x8x1xf32> to vector<3x8x128xf32>
    %17 = arith.mulf %14, %16 : vector<3x8x128xf32>
    %c0_6 = arith.constant 0 : index
    %c0_7 = arith.constant 0 : index
    %c0_8 = arith.constant 0 : index
    %18 = vector.load %arg4[%c0_6, %c0_7, %c0_8] : memref<1x8x128xf32, #tpu.memory_space<vmem>>, vector<1x8x128xf32>
    %19 = vector.broadcast %18 : vector<1x8x128xf32> to vector<3x8x128xf32>
    %20 = arith.addf %17, %19 : vector<3x8x128xf32>
    %21 = tpu.transpose %20, [0, 2, 1] : vector<3x8x128xf32> -> vector<3x128x8xf32>
    %c0_9 = arith.constant 0 : index
    %c0_10 = arith.constant 0 : index
    %c0_11 = arith.constant 0 : index
    %c0_12 = arith.constant 0 : index
    %22 = vector.load %arg5[%c0_9, %c0_10, %c0_11, %c0_12] : memref<1x3x128x8xf32, #tpu.memory_space<vmem>>, vector<1x3x128x8xf32>
    %23 = vector.shape_cast %22 : vector<1x3x128x8xf32> to vector<3x128x8xf32>
    %24 = vector.shape_cast %21 : vector<3x128x8xf32> to vector<1x3x128x8xf32>
    tpu.vector_store %arg5[%c0_9, %c0_10, %c0_11, %c0_12], %24 {strides = array<i32>} : memref<1x3x128x8xf32, #tpu.memory_space<vmem>>, vector<1x3x128x8xf32>,
    return
  }
  func.func @transform_0(%arg0: i32, %arg1: i32) -> (i32, i32, i32, i32) {
    %c0_i32 = arith.constant 0 : i32
    %c0_i32_0 = arith.constant 0 : i32
    %c0_i32_1 = arith.constant 0 : i32
    return %arg0, %c0_i32, %c0_i32_0, %arg1 : i32, i32, i32, i32
  }
  func.func @transform_1(%arg0: i32, %arg1: i32) -> (i32, i32, i32) {
    %c0_i32 = arith.constant 0 : i32
    %c0_i32_0 = arith.constant 0 : i32
    %c0_i32_1 = arith.constant 0 : i32
    %c0_i32_2 = arith.constant 0 : i32
    return %c0_i32, %c0_i32_0, %c0_i32_1 : i32, i32, i32
  }
  func.func @transform_2(%arg0: i32, %arg1: i32) -> (i32, i32, i32) {
    %c0_i32 = arith.constant 0 : i32
    %c0_i32_0 = arith.constant 0 : i32
    %c0_i32_1 = arith.constant 0 : i32
    return %c0_i32, %c0_i32_0, %arg1 : i32, i32, i32
  }
  func.func @transform_3(%arg0: i32, %arg1: i32) -> (i32, i32, i32, i32) {
    %c0_i32 = arith.constant 0 : i32
    %c0_i32_0 = arith.constant 0 : i32
    %c0_i32_1 = arith.constant 0 : i32
    return %arg0, %c0_i32, %arg1, %c0_i32_0 : i32, i32, i32, i32
  }
}

</mosaic_0001>

<llo_original>
// kernel: tpu_custom_call.1
$region0: #{tpu_custom_call.1}
  #allocation0 [shape = 'u32[]', space=smem, size = 0x4, offset = 0x4, fixed_abs, tag = 'smem constant byte address 0x4 - core index']
  #allocation1 [shape = 'u32[72,128]{1,0:T(1,128)}', space=vmem, size = 0x9000, scoped, tag = 'internal scratch']
  %s0 = inlined_call_operand.hbm [shape: f32[2,3,8,256], index: 0, kind: input, shape index: {}]
  %s1 = inlined_call_operand.vmem [shape: f32[3,8,1], index: 1, kind: input, shape index: {}]
  %s2 = inlined_call_operand.vmem [shape: f32[1,8,256], index: 2, kind: input, shape index: {}]
  %s3 = inlined_call_operand.vmem [shape: f32[2,3,256,8], index: 3, kind: output, shape index: {}]
  %s4 = sld [smem:[#allocation0]]
  $region83: #{tpu_custom_call.1} parent=0
    _
  %s6 = ssub.s32 1, %s4
  %s7 = scalar_select 0, %s6, %s4
  $region1: #{tpu_custom_call.1} parent=0
    #allocation2 [shape = 'u8[24576]{0}', space=vmem, size = 0x6000, scoped, tag = 'input window, operand 0']
    #allocation3 [shape = 's32[2]{0}', space=sflag, size = 0x8, scoped, tag = 'scoped memory for tpu_custom_call.1']
    #allocation4 [shape = 'u8[393216]{0}', space=vmem, size = 0x60000, scoped, tag = 'output window, operand 0']
    %8 = vsyncpa [#allocation3], 0
    %s9 = scalar_lea.sflag [#allocation3], 1
    %10 = vsyncpa %s9, 0
    loop: start=0, step=1, limit=6
    $region2: #{tpu_custom_call.1} parent=1 // loop_pre_header
      _
    $region3: #{tpu_custom_call.1} parent=1 // loop_header
      %s12 = sphi 0, %s16
      %p13 = scmp.ge.s32.totalorder %s12, 6
      %s19 = sphi 0, %s31
      %s20 = sphi 0, %s27
      %s21 = sphi 0, %s19
      %s22 = sphi 0, %s20
      %s23 = sphi 0, %s21
      %s24 = sphi 0, %s22
      %s36 = sphi 0, %s38
      %s39 = sphi 0, %s36
      %s40 = sphi 0, %s39
      %s56 = sphi 0, %s40
      %s60 = sphi 0, %s60
      %s62 = sphi 0, %s60
      %s63 = sphi 0, %s62
      %s77 = sphi 0, %s63
      %s83 = sphi 0, %s85
      %s86 = sphi 0, %s83
      %s87 = sphi 0, %s86
      %s103 = sphi 0, %s87
      %s111 = sphi 0, %s113
      %s114 = sphi 0, %s111
      %s115 = sphi 0, %s114
      %s131 = sphi 0, %s115
    $region4: #{tpu_custom_call.1} parent=1 // loop_header_branch
      %15 = sbr.rel (%p13) target = $region8
    $region5: #{tpu_custom_call.1} parent=1 // loop_body
      %s17 = ssub.s32 %s12, 1
      %s18 = ssub.s32 %s12, 2
      %s25 = sadd.s32 1, %s20
      %p26 = scmp.ge.s32.totalorder %s25, 2
      %s27 = scalar_select %p26, 0, %s25
      %s28 = sadd.s32 1, %s19
      %s29 = scalar_select %p26, %s28, %s19
      %p30 = scmp.ge.s32.totalorder %s29, 2
      %s31 = scalar_select %p30, 0, %s29
      %s32 = ssub.s32 %s19, %s31
      %s33 = ssub.s32 %s20, %s27
      %s34 = sor.u32 %s32, %s33
      %p35 = scmp.eq.s32.totalorder %s34, 0
      %s37 = sadd.s32 %s36, 1
      %s38 = scalar_select %p35, %s36, %s37
      %p41 = pneg %p35
      %p42 = scmp.eq.s32.totalorder %s12, 3
      %p43 = por %p41, %p42
      %p44 = scmp.ne.s32.totalorder %s36, %s39
      %p45 = scmp.eq.s32.totalorder %s12, 0
      %p46 = por %p44, %p45
      %p47 = scmp.ne.s32.totalorder %s36, %s39
      %p48 = scmp.eq.s32.totalorder %s17, 3
      %p49 = por %p47, %p48
      %p50 = scmp.ne.s32.totalorder %s39, %s40
      %p51 = scmp.eq.s32.totalorder %s17, 0
      %p52 = por %p50, %p51
      %p53 = scmp.ne.s32.totalorder %s39, %s40
      %p54 = scmp.eq.s32.totalorder %s18, 3
      %p55 = por %p53, %p54
      %p57 = scmp.ne.s32.totalorder %s40, %s56
      %p58 = scmp.eq.s32.totalorder %s18, 0
      %p59 = por %p57, %p58
      %s61 = sadd.s32 %s60, 1
      %p64 = scmp.eq.s32.totalorder %s12, 3
      %p65 = scmp.ne.s32.totalorder %s60, %s62
      %p66 = scmp.eq.s32.totalorder %s12, 0
      %p67 = por %p65, %p66
      %p68 = scmp.ne.s32.totalorder %s60, %s62
      %p69 = scmp.eq.s32.totalorder %s17, 3
      %p70 = por %p68, %p69
      %p71 = scmp.ne.s32.totalorder %s62, %s63
      %p72 = scmp.eq.s32.totalorder %s17, 0
      %p73 = por %p71, %p72
      %p74 = scmp.ne.s32.totalorder %s62, %s63
      %p75 = scmp.eq.s32.totalorder %s18, 3
      %p76 = por %p74, %p75
      %p78 = scmp.ne.s32.totalorder %s63, %s77
      %p79 = scmp.eq.s32.totalorder %s18, 0
      %p80 = por %p78, %p79
      %s81 = ssub.s32 %s20, %s27
      %p82 = scmp.eq.s32.totalorder %s81, 0
      %s84 = sadd.s32 %s83, 1
      %s85 = scalar_select %p82, %s83, %s84
      %p88 = pneg %p82
      %p89 = scmp.eq.s32.totalorder %s12, 3
      %p90 = por %p88, %p89
      %p91 = scmp.ne.s32.totalorder %s83, %s86
      %p92 = scmp.eq.s32.totalorder %s12, 0
      %p93 = por %p91, %p92
      %p94 = scmp.ne.s32.totalorder %s83, %s86
      %p95 = scmp.eq.s32.totalorder %s17, 3
      %p96 = por %p94, %p95
      %p97 = scmp.ne.s32.totalorder %s86, %s87
      %p98 = scmp.eq.s32.totalorder %s17, 0
      %p99 = por %p97, %p98
      %p100 = scmp.ne.s32.totalorder %s86, %s87
      %p101 = scmp.eq.s32.totalorder %s18, 3
      %p102 = por %p100, %p101
      %p104 = scmp.ne.s32.totalorder %s87, %s103
      %p105 = scmp.eq.s32.totalorder %s18, 0
      %p106 = por %p104, %p105
      %s107 = ssub.s32 %s19, %s31
      %s108 = ssub.s32 %s20, %s27
      %s109 = sor.u32 %s107, %s108
      %p110 = scmp.eq.s32.totalorder %s109, 0
      %s112 = sadd.s32 %s111, 1
      %s113 = scalar_select %p110, %s111, %s112
      %p116 = pneg %p110
      %p117 = scmp.eq.s32.totalorder %s12, 3
      %p118 = por %p116, %p117
      %p119 = scmp.ne.s32.totalorder %s111, %s114
      %p120 = scmp.eq.s32.totalorder %s12, 0
      %p121 = por %p119, %p120
      %p122 = scmp.ne.s32.totalorder %s111, %s114
      %p123 = scmp.eq.s32.totalorder %s17, 3
      %p124 = por %p122, %p123
      %p125 = scmp.ne.s32.totalorder %s114, %s115
      %p126 = scmp.eq.s32.totalorder %s17, 0
      %p127 = por %p125, %p126
      %p128 = scmp.ne.s32.totalorder %s114, %s115
      %p129 = scmp.eq.s32.totalorder %s18, 3
      %p130 = por %p128, %p129
      %p132 = scmp.ne.s32.totalorder %s115, %s131
      %p133 = scmp.eq.s32.totalorder %s18, 0
      %p134 = por %p132, %p133
      %p135 = scmp.le.s32.totalorder 1, %s12
      %p136 = scmp.lt.s32.totalorder %s12, 5
      %p137 = pnand %p135, %p136
      %p138 = pneg %p137
      // Predicated region
      $region9: #{tpu_custom_call.1} parent=5 // pred_check
        _
      $region10: #{tpu_custom_call.1} parent=5 // pred_check_branch
        %140 = sbr.rel (%p137) target = $region12
      $region11: #{tpu_custom_call.1} parent=5 // pred_region
        %s141 = ssub.s32 %s12, 1
        // Predicated region
        $region13: #{tpu_custom_call.1} parent=11 // pred_check
          %p142 = pneg %p73
        $region14: #{tpu_custom_call.1} parent=11 // pred_check_branch
          %144 = sbr.rel (%p142) target = $region16
        $region15: #{tpu_custom_call.1} parent=11 // pred_region
          _
        $region16: #{tpu_custom_call.1} parent=11 // pred_fallthru
          _
      $region12: #{tpu_custom_call.1} parent=5 // pred_fallthru
        _
      %p145 = scmp.lt.s32.totalorder %s12, 4
      // Predicated region
      $region17: #{tpu_custom_call.1} parent=5 // pred_check
        %p146 = pneg %p145
      $region18: #{tpu_custom_call.1} parent=5 // pred_check_branch
        %148 = sbr.rel (%p146) target = $region20
      $region19: #{tpu_custom_call.1} parent=5 // pred_region
        // Predicated region
        $region21: #{tpu_custom_call.1} parent=19 // pred_check
          %p149 = pneg %p46
        $region22: #{tpu_custom_call.1} parent=19 // pred_check_branch
          %151 = sbr.rel (%p149) target = $region24
        $region23: #{tpu_custom_call.1} parent=19 // pred_region
          %s152 = sand.u32 %s36, 1
          %s153 = scalar_lea.sflag [#allocation3], %s152
          %s154 = sand.u32 %s36, 1
          %s155 = smul.addr %s154, 24
          %s156 = scalar_lea.vmem [#allocation2], %s155
          %158 = vsyncadd %s153, 0
          %s159 = smul.addr %s19, 6
          %s160 = sadd.s32 %s20, %s159
          %s161 = smul.addr %s160, 8
          %s162 = scalar_lea.hbm %s0, %s161
          %s163 = sshll.u32 %s162, 4
          %s164 = int_to_ptr.hbm [resolvable:$true] %s163
          %s165 = sshll.u32 %s156, 4
          %s166 = int_to_ptr.vmem [resolvable:$true] %s165
          %171 = dma.hbm_to_vmem [thread:$0]  %s164, 384, %s166, %s153, 256, 128, 8
        $region24: #{tpu_custom_call.1} parent=19 // pred_fallthru
          _
        // Predicated region
        $region25: #{tpu_custom_call.1} parent=19 // pred_check
          %p172 = pneg %p93
        $region26: #{tpu_custom_call.1} parent=19 // pred_check_branch
          %174 = sbr.rel (%p172) target = $region28
        $region27: #{tpu_custom_call.1} parent=19 // pred_region
          %p175 = scmp.lt.s32.totalorder %s20, 1
          %s176 = scalar_select %p175, %s20, 1
          %s177 = smul.addr %s176, 8
          %s178 = scalar_lea.vmem %s2, %s177
        $region28: #{tpu_custom_call.1} parent=19 // pred_fallthru
          _
      $region20: #{tpu_custom_call.1} parent=5 // pred_fallthru
        _
      %p179 = scmp.le.s32.totalorder 1, %s12
      %p180 = scmp.lt.s32.totalorder %s12, 5
      %p181 = pnand %p179, %p180
      %p182 = pneg %p181
      // Predicated region
      $region29: #{tpu_custom_call.1} parent=5 // pred_check
        _
      $region30: #{tpu_custom_call.1} parent=5 // pred_check_branch
        %184 = sbr.rel (%p181) target = $region32
      $region31: #{tpu_custom_call.1} parent=5 // pred_region
        %s185 = ssub.s32 %s12, 1
        %s186 = sand.u32 %s39, 1
        %s187 = scalar_lea.sflag [#allocation3], %s186
        %s188 = sand.u32 %s39, 1
        %s189 = smul.addr %s188, 24
        %s190 = scalar_lea.vmem [#allocation2], %s189
        // Predicated region
        $region33: #{tpu_custom_call.1} parent=31 // pred_check
          %p191 = pneg %p52
        $region34: #{tpu_custom_call.1} parent=31 // pred_check_branch
          %193 = sbr.rel (%p191) target = $region36
        $region35: #{tpu_custom_call.1} parent=31 // pred_region
          %195 = dma.done %s187, 384
        $region36: #{tpu_custom_call.1} parent=31 // pred_fallthru
          _
        %s196 = sand.u32 %s39, 1
        %s197 = scalar_lea.sflag [#allocation3], %s196
        %s198 = sand.u32 %s39, 1
        %s199 = smul.addr %s198, 24
        %s200 = scalar_lea.vmem [#allocation2], %s199
        %p201 = pneg %p52
        %p202 = pneg %p49
        %p203 = pneg %p73
        %p204 = pneg %p70
        %p205 = scmp.lt.s32.totalorder %s22, 1
        %s206 = scalar_select %p205, %s22, 1
        %s207 = smul.addr %s206, 8
        %s208 = scalar_lea.vmem %s2, %s207
        %p209 = pneg %p99
        %p210 = pneg %p96
        %p211 = pneg %p127
        %p212 = pneg %p124
        %s213 = sand.u32 %s114, 1
        %s214 = sand.u32 %s114, 1
        %s215 = smul.addr %s214, 384
        %s216 = scalar_lea.vmem [#allocation4], %s215
        %p217 = scmp.lt.s32.totalorder %s22, 1
        %s218 = scalar_select %p217, %s22, 1
        %s219 = smul.addr %s218, 8
        %s220 = scalar_lea.vmem %s2, %s219
        %s221 = smul.u32 16, %s22
        %v222 = vld [vmem:[%s190] sm:$0xff]
        %v223 = vld [vmem:[%s190 + $0x8] sm:$0xff]
        %v224 = vld [vmem:[%s190 + $0x10] sm:$0xff]
        %v225 = vxor.u32 %v222, 2147483648
        %v226 = vxor.u32 %v223, 2147483648
        %v227 = vxor.u32 %v224, 2147483648
        %v228 = vmul.f32 %v225, 1.442695
        %v229 = vpow.pop %v228
        %v230 = vmul.f32 %v226, 1.442695
        %v231 = vpow.pop %v230
        %v232 = vmul.f32 %v227, 1.442695
        %v233 = vpow.pop %v232
        %v234 = vadd.f32 %v229, 1.0
        %v235 = vadd.f32 %v231, 1.0
        %v236 = vadd.f32 %v233, 1.0
        %v237 = vrcp.pop %v234
        %v238 = vmul.f32 %v234, %v237
        %v239 = vsub.f32 1.0, %v238
        %v240 = vmul.f32 %v237, %v239
        %v241 = vadd.f32 %v237, %v240
        %vm242 = vweird.f32 %v234
        %vm243 = vweird.f32 %v237
        %vm244 = vmor %vm242, %vm243
        %v245 = vsel %vm244, %v237, %v241
        %v246 = vand.u32 2147483647, %v234
        %vm247 = vcmp.eq.f32.partialorder %v246, 8.507059e+37
        %v248 = vand.u32 %v234, 2147483648
        %v249 = vor.u32 1.1754944e-38, %v248
        %v250 = vsel %vm247, %v249, %v245
        %v251 = vmul.f32 1.0, %v250
        %v252 = vrcp.pop %v235
        %v253 = vmul.f32 %v235, %v252
        %v254 = vsub.f32 1.0, %v253
        %v255 = vmul.f32 %v252, %v254
        %v256 = vadd.f32 %v252, %v255
        %vm257 = vweird.f32 %v235
        %vm258 = vweird.f32 %v252
        %vm259 = vmor %vm257, %vm258
        %v260 = vsel %vm259, %v252, %v256
        %v261 = vand.u32 2147483647, %v235
        %vm262 = vcmp.eq.f32.partialorder %v261, 8.507059e+37
        %v263 = vand.u32 %v235, 2147483648
        %v264 = vor.u32 1.1754944e-38, %v263
        %v265 = vsel %vm262, %v264, %v260
        %v266 = vmul.f32 1.0, %v265
        %v267 = vrcp.pop %v236
        %v268 = vmul.f32 %v236, %v267
        %v269 = vsub.f32 1.0, %v268
        %v270 = vmul.f32 %v267, %v269
        %v271 = vadd.f32 %v267, %v270
        %vm272 = vweird.f32 %v236
        %vm273 = vweird.f32 %v267
        %vm274 = vmor %vm272, %vm273
        %v275 = vsel %vm274, %v267, %v271
        %v276 = vand.u32 2147483647, %v236
        %vm277 = vcmp.eq.f32.partialorder %v276, 8.507059e+37
        %v278 = vand.u32 %v236, 2147483648
        %v279 = vor.u32 1.1754944e-38, %v278
        %v280 = vsel %vm277, %v279, %v275
        %v281 = vmul.f32 1.0, %v280
        %v282 = vlaneseq
        %v283 = vshrl.u32 %v282, 7
        %vm284 = vcmp.eq.s32.totalorder %v283, 2
        %vm285 = vcmp.eq.s32.totalorder %v283, 3
        %vm286 = vmor %vm284, %vm285
        %v287 = vmul.f32 %v222, 1.442695
        %v288 = vpow.pop %v287
        %v289 = vmul.f32 %v223, 1.442695
        %v290 = vpow.pop %v289
        %v291 = vmul.f32 %v224, 1.442695
        %v292 = vpow.pop %v291
        %v293 = vsel %vm286, %v288, %v251
        %v294 = vsel %vm286, %v290, %v266
        %v295 = vsel %vm286, %v292, %v281
        %v296 = vld [vmem:[%s1] sm:$0xff]
        %v297 = vld [vmem:[%s1 + $0x8] sm:$0xff]
        %v298 = vld [vmem:[%s1 + $0x10] sm:$0xff]
        %300 = vset.pattern.permute.xlu0 0
        %301 = vperm.xlu0 %300, %v296
        %v302 = vpop.permute.xlu0 %301
        %305 = vset.pattern.permute.xlu0 0
        %306 = vperm.xlu0 %305, %v297
        %v307 = vpop.permute.xlu0 %306
        %310 = vset.pattern.permute.xlu0 0
        %311 = vperm.xlu0 %310, %v298
        %v312 = vpop.permute.xlu0 %311
        %v314 = vmul.f32 %v293, %v302
        %v315 = vmul.f32 %v294, %v307
        %v316 = vmul.f32 %v295, %v312
        %v317 = vld [vmem:[%s220] sm:$0xff]
        %v318 = vadd.f32 %v314, %v317
        %v319 = vadd.f32 %v315, %v317
        %v320 = vadd.f32 %v316, %v317
        %321 = vxpose.xlu0.b32.start [1/16] %v318, 128
        %322 = vxpose.xlu0.b32.cont [2/16] 0.0, 128
        %323 = vxpose.xlu0.b32.cont [3/16] 0.0, 128
        %324 = vxpose.xlu0.b32.cont [4/16] 0.0, 128
        %325 = vxpose.xlu0.b32.cont [5/16] 0.0, 128
        %326 = vxpose.xlu0.b32.cont [6/16] 0.0, 128
        %327 = vxpose.xlu0.b32.cont [7/16] 0.0, 128
        %328 = vxpose.xlu0.b32.cont [8/16] 0.0, 128
        %329 = vxpose.xlu0.b32.cont [9/16] 0.0, 128
        %330 = vxpose.xlu0.b32.cont [10/16] 0.0, 128
        %331 = vxpose.xlu0.b32.cont [11/16] 0.0, 128
        %332 = vxpose.xlu0.b32.cont [12/16] 0.0, 128
        %333 = vxpose.xlu0.b32.cont [13/16] 0.0, 128
        %334 = vxpose.xlu0.b32.cont [14/16] 0.0, 128
        %335 = vxpose.xlu0.b32.cont [15/16] 0.0, 128
        %336 = vxpose.xlu0.b32.end [16/16] 0.0, 128
        %v337 = vpop.trf.xlu0
        %v338 = vpop.trf.xlu0
        %v339 = vpop.trf.xlu0
        %v340 = vpop.trf.xlu0
        %v341 = vpop.trf.xlu0
        %v342 = vpop.trf.xlu0
        %v343 = vpop.trf.xlu0
        %v344 = vpop.trf.xlu0
        %v345 = vpop.trf.xlu0
        %v346 = vpop.trf.xlu0
        %v347 = vpop.trf.xlu0
        %v348 = vpop.trf.xlu0
        %v349 = vpop.trf.xlu0
        %v350 = vpop.trf.xlu0
        %v351 = vpop.trf.xlu0
        %v352 = vpop.trf.xlu0
        %353 = vxpose.xlu0.b32.start [1/16] %v319, 128
        %354 = vxpose.xlu0.b32.cont [2/16] 0.0, 128
        %355 = vxpose.xlu0.b32.cont [3/16] 0.0, 128
        %356 = vxpose.xlu0.b32.cont [4/16] 0.0, 128
        %357 = vxpose.xlu0.b32.cont [5/16] 0.0, 128
        %358 = vxpose.xlu0.b32.cont [6/16] 0.0, 128
        %359 = vxpose.xlu0.b32.cont [7/16] 0.0, 128
        %360 = vxpose.xlu0.b32.cont [8/16] 0.0, 128
        %361 = vxpose.xlu0.b32.cont [9/16] 0.0, 128
        %362 = vxpose.xlu0.b32.cont [10/16] 0.0, 128
        %363 = vxpose.xlu0.b32.cont [11/16] 0.0, 128
        %364 = vxpose.xlu0.b32.cont [12/16] 0.0, 128
        %365 = vxpose.xlu0.b32.cont [13/16] 0.0, 128
        %366 = vxpose.xlu0.b32.cont [14/16] 0.0, 128
        %367 = vxpose.xlu0.b32.cont [15/16] 0.0, 128
        %368 = vxpose.xlu0.b32.end [16/16] 0.0, 128
        %v369 = vpop.trf.xlu0
        %v370 = vpop.trf.xlu0
        %v371 = vpop.trf.xlu0
        %v372 = vpop.trf.xlu0
        %v373 = vpop.trf.xlu0
        %v374 = vpop.trf.xlu0
        %v375 = vpop.trf.xlu0
        %v376 = vpop.trf.xlu0
        %v377 = vpop.trf.xlu0
        %v378 = vpop.trf.xlu0
        %v379 = vpop.trf.xlu0
        %v380 = vpop.trf.xlu0
        %v381 = vpop.trf.xlu0
        %v382 = vpop.trf.xlu0
        %v383 = vpop.trf.xlu0
        %v384 = vpop.trf.xlu0
        %385 = vxpose.xlu0.b32.start [1/16] %v320, 128
        %386 = vxpose.xlu0.b32.cont [2/16] 0.0, 128
        %387 = vxpose.xlu0.b32.cont [3/16] 0.0, 128
        %388 = vxpose.xlu0.b32.cont [4/16] 0.0, 128
        %389 = vxpose.xlu0.b32.cont [5/16] 0.0, 128
        %390 = vxpose.xlu0.b32.cont [6/16] 0.0, 128
        %391 = vxpose.xlu0.b32.cont [7/16] 0.0, 128
        %392 = vxpose.xlu0.b32.cont [8/16] 0.0, 128
        %393 = vxpose.xlu0.b32.cont [9/16] 0.0, 128
        %394 = vxpose.xlu0.b32.cont [10/16] 0.0, 128
        %395 = vxpose.xlu0.b32.cont [11/16] 0.0, 128
        %396 = vxpose.xlu0.b32.cont [12/16] 0.0, 128
        %397 = vxpose.xlu0.b32.cont [13/16] 0.0, 128
        %398 = vxpose.xlu0.b32.cont [14/16] 0.0, 128
        %399 = vxpose.xlu0.b32.cont [15/16] 0.0, 128
        %400 = vxpose.xlu0.b32.end [16/16] 0.0, 128
        %v401 = vpop.trf.xlu0
        %v402 = vpop.trf.xlu0
        %v403 = vpop.trf.xlu0
        %v404 = vpop.trf.xlu0
        %v405 = vpop.trf.xlu0
        %v406 = vpop.trf.xlu0
        %v407 = vpop.trf.xlu0
        %v408 = vpop.trf.xlu0
        %v409 = vpop.trf.xlu0
        %v410 = vpop.trf.xlu0
        %v411 = vpop.trf.xlu0
        %v412 = vpop.trf.xlu0
        %v413 = vpop.trf.xlu0
        %v414 = vpop.trf.xlu0
        %v415 = vpop.trf.xlu0
        %v416 = vpop.trf.xlu0
        %vm417 = vcmask 64512
        %418 = vst.msk [vmem:[%s216] sm:$0xff] %vm417, %v337
        %419 = vst.msk [vmem:[%s216 + $0x8] sm:$0xff] %vm417, %v338
        %420 = vst.msk [vmem:[%s216 + $0x10] sm:$0xff] %vm417, %v339
        %421 = vst.msk [vmem:[%s216 + $0x18] sm:$0xff] %vm417, %v340
        %422 = vst.msk [vmem:[%s216 + $0x20] sm:$0xff] %vm417, %v341
        %423 = vst.msk [vmem:[%s216 + $0x28] sm:$0xff] %vm417, %v342
        %424 = vst.msk [vmem:[%s216 + $0x30] sm:$0xff] %vm417, %v343
        %425 = vst.msk [vmem:[%s216 + $0x38] sm:$0xff] %vm417, %v344
        %426 = vst.msk [vmem:[%s216 + $0x40] sm:$0xff] %vm417, %v345
        %427 = vst.msk [vmem:[%s216 + $0x48] sm:$0xff] %vm417, %v346
        %428 = vst.msk [vmem:[%s216 + $0x50] sm:$0xff] %vm417, %v347
        %429 = vst.msk [vmem:[%s216 + $0x58] sm:$0xff] %vm417, %v348
        %430 = vst.msk [vmem:[%s216 + $0x60] sm:$0xff] %vm417, %v349
        %431 = vst.msk [vmem:[%s216 + $0x68] sm:$0xff] %vm417, %v350
        %432 = vst.msk [vmem:[%s216 + $0x70] sm:$0xff] %vm417, %v351
        %433 = vst.msk [vmem:[%s216 + $0x78] sm:$0xff] %vm417, %v352
        %434 = vst.msk [vmem:[%s216 + $0x80] sm:$0xff] %vm417, %v369
        %435 = vst.msk [vmem:[%s216 + $0x88] sm:$0xff] %vm417, %v370
        %436 = vst.msk [vmem:[%s216 + $0x90] sm:$0xff] %vm417, %v371
        %437 = vst.msk [vmem:[%s216 + $0x98] sm:$0xff] %vm417, %v372
        %438 = vst.msk [vmem:[%s216 + $0xa0] sm:$0xff] %vm417, %v373
        %439 = vst.msk [vmem:[%s216 + $0xa8] sm:$0xff] %vm417, %v374
        %440 = vst.msk [vmem:[%s216 + $0xb0] sm:$0xff] %vm417, %v375
        %441 = vst.msk [vmem:[%s216 + $0xb8] sm:$0xff] %vm417, %v376
        %442 = vst.msk [vmem:[%s216 + $0xc0] sm:$0xff] %vm417, %v377
        %443 = vst.msk [vmem:[%s216 + $0xc8] sm:$0xff] %vm417, %v378
        %444 = vst.msk [vmem:[%s216 + $0xd0] sm:$0xff] %vm417, %v379
        %445 = vst.msk [vmem:[%s216 + $0xd8] sm:$0xff] %vm417, %v380
        %446 = vst.msk [vmem:[%s216 + $0xe0] sm:$0xff] %vm417, %v381
        %447 = vst.msk [vmem:[%s216 + $0xe8] sm:$0xff] %vm417, %v382
        %448 = vst.msk [vmem:[%s216 + $0xf0] sm:$0xff] %vm417, %v383
        %449 = vst.msk [vmem:[%s216 + $0xf8] sm:$0xff] %vm417, %v384
        %450 = vst.msk [vmem:[%s216 + $0x100] sm:$0xff] %vm417, %v401
        %451 = vst.msk [vmem:[%s216 + $0x108] sm:$0xff] %vm417, %v402
        %452 = vst.msk [vmem:[%s216 + $0x110] sm:$0xff] %vm417, %v403
        %453 = vst.msk [vmem:[%s216 + $0x118] sm:$0xff] %vm417, %v404
        %454 = vst.msk [vmem:[%s216 + $0x120] sm:$0xff] %vm417, %v405
        %455 = vst.msk [vmem:[%s216 + $0x128] sm:$0xff] %vm417, %v406
        %456 = vst.msk [vmem:[%s216 + $0x130] sm:$0xff] %vm417, %v407
        %457 = vst.msk [vmem:[%s216 + $0x138] sm:$0xff] %vm417, %v408
        %458 = vst.msk [vmem:[%s216 + $0x140] sm:$0xff] %vm417, %v409
        %459 = vst.msk [vmem:[%s216 + $0x148] sm:$0xff] %vm417, %v410
        %460 = vst.msk [vmem:[%s216 + $0x150] sm:$0xff] %vm417, %v411
        %461 = vst.msk [vmem:[%s216 + $0x158] sm:$0xff] %vm417, %v412
        %462 = vst.msk [vmem:[%s216 + $0x160] sm:$0xff] %vm417, %v413
        %463 = vst.msk [vmem:[%s216 + $0x168] sm:$0xff] %vm417, %v414
        %464 = vst.msk [vmem:[%s216 + $0x170] sm:$0xff] %vm417, %v415
        %465 = vst.msk [vmem:[%s216 + $0x178] sm:$0xff] %vm417, %v416
        %s466 = sand.u32 %s114, 1
        %s467 = sand.u32 %s114, 1
        %s468 = smul.addr %s467, 384
        %s469 = scalar_lea.vmem [#allocation4], %s468
        // Predicated region
        $region37: #{tpu_custom_call.1} parent=31 // pred_check
          %p470 = pneg %p124
        $region38: #{tpu_custom_call.1} parent=31 // pred_check_branch
          %472 = sbr.rel (%p470) target = $region40
        $region39: #{tpu_custom_call.1} parent=31 // pred_region
          %s473 = smul.u32 16, %s22
          %s474 = smul.addr %s21, 96
          %s475 = sadd.s32 %s473, %s474
          %s476 = smul.addr %s475, 8
          %s477 = scalar_lea.vmem %s3, %s476
          // Predicated region
          $region41: #{tpu_custom_call.1} parent=39 // pred_check
            _
          $region42: #{tpu_custom_call.1} parent=39 // pred_check_branch
            %479 = sbr.rel (0) target = $region44
          $region43: #{tpu_custom_call.1} parent=39 // pred_region
            // Predicated region
            $region45: #{tpu_custom_call.1} parent=43 // pred_check
              _
            $region46: #{tpu_custom_call.1} parent=43 // pred_check_branch
              %481 = sbr.rel (0) target = $region48
            $region47: #{tpu_custom_call.1} parent=43 // pred_region
              // Predicated region
              $region60: #{tpu_custom_call.1} parent=47 // pred_check
                _
              $region61: #{tpu_custom_call.1} parent=47 // pred_check_branch
                %591 = sbr.rel (0) target = $region63
              $region62: #{tpu_custom_call.1} parent=47 // pred_region
                loop: start=0, step=1, limit=1
                $region64: #{tpu_custom_call.1} parent=62 // loop_pre_header
                  _
                $region65: #{tpu_custom_call.1} parent=62 // loop_header
                  %s593 = sphi 0, %s597
                  %p594 = scmp.ge.s32.totalorder %s593, 1
                  %s598 = sphi %s469, %s469
                  %s599 = sphi %s477, %s477
                $region66: #{tpu_custom_call.1} parent=62 // loop_header_branch
                  %596 = sbr.rel (%p594) target = $region70
                $region67: #{tpu_custom_call.1} parent=62 // loop_body
                  %v600 = vld [vmem:[%s598] sm:$0xff]
                  %601 = vst [vmem:[%s599] sm:$0xff] %v600
                  %v602 = vld [vmem:[%s598 + $0x8] sm:$0xff]
                  %603 = vst [vmem:[%s599 + $0x8] sm:$0xff] %v602
                  %v604 = vld [vmem:[%s598 + $0x10] sm:$0xff]
                  %605 = vst [vmem:[%s599 + $0x10] sm:$0xff] %v604
                  %v606 = vld [vmem:[%s598 + $0x18] sm:$0xff]
                  %607 = vst [vmem:[%s599 + $0x18] sm:$0xff] %v606
                  %v608 = vld [vmem:[%s598 + $0x20] sm:$0xff]
                  %609 = vst [vmem:[%s599 + $0x20] sm:$0xff] %v608
                  %v610 = vld [vmem:[%s598 + $0x28] sm:$0xff]
                  %611 = vst [vmem:[%s599 + $0x28] sm:$0xff] %v610
                  %v612 = vld [vmem:[%s598 + $0x30] sm:$0xff]
                  %613 = vst [vmem:[%s599 + $0x30] sm:$0xff] %v612
                  %v614 = vld [vmem:[%s598 + $0x38] sm:$0xff]
                  %615 = vst [vmem:[%s599 + $0x38] sm:$0xff] %v614
                  %v616 = vld [vmem:[%s598 + $0x40] sm:$0xff]
                  %617 = vst [vmem:[%s599 + $0x40] sm:$0xff] %v616
                  %v618 = vld [vmem:[%s598 + $0x48] sm:$0xff]
                  %619 = vst [vmem:[%s599 + $0x48] sm:$0xff] %v618
                  %v620 = vld [vmem:[%s598 + $0x50] sm:$0xff]
                  %621 = vst [vmem:[%s599 + $0x50] sm:$0xff] %v620
                  %v622 = vld [vmem:[%s598 + $0x58] sm:$0xff]
                  %623 = vst [vmem:[%s599 + $0x58] sm:$0xff] %v622
                  %v624 = vld [vmem:[%s598 + $0x60] sm:$0xff]
                  %625 = vst [vmem:[%s599 + $0x60] sm:$0xff] %v624
                  %v626 = vld [vmem:[%s598 + $0x68] sm:$0xff]
                  %627 = vst [vmem:[%s599 + $0x68] sm:$0xff] %v626
                  %v628 = vld [vmem:[%s598 + $0x70] sm:$0xff]
                  %629 = vst [vmem:[%s599 + $0x70] sm:$0xff] %v628
                  %v630 = vld [vmem:[%s598 + $0x78] sm:$0xff]
                  %631 = vst [vmem:[%s599 + $0x78] sm:$0xff] %v630
                  %v632 = vld [vmem:[%s598 + $0x80] sm:$0xff]
                  %633 = vst [vmem:[%s599 + $0x100] sm:$0xff] %v632
                  %v634 = vld [vmem:[%s598 + $0x88] sm:$0xff]
                  %635 = vst [vmem:[%s599 + $0x108] sm:$0xff] %v634
                  %v636 = vld [vmem:[%s598 + $0x90] sm:$0xff]
                  %637 = vst [vmem:[%s599 + $0x110] sm:$0xff] %v636
                  %v638 = vld [vmem:[%s598 + $0x98] sm:$0xff]
                  %639 = vst [vmem:[%s599 + $0x118] sm:$0xff] %v638
                  %v640 = vld [vmem:[%s598 + $0xa0] sm:$0xff]
                  %641 = vst [vmem:[%s599 + $0x120] sm:$0xff] %v640
                  %v642 = vld [vmem:[%s598 + $0xa8] sm:$0xff]
                  %643 = vst [vmem:[%s599 + $0x128] sm:$0xff] %v642
                  %v644 = vld [vmem:[%s598 + $0xb0] sm:$0xff]
                  %645 = vst [vmem:[%s599 + $0x130] sm:$0xff] %v644
                  %v646 = vld [vmem:[%s598 + $0xb8] sm:$0xff]
                  %647 = vst [vmem:[%s599 + $0x138] sm:$0xff] %v646
                  %v648 = vld [vmem:[%s598 + $0xc0] sm:$0xff]
                  %649 = vst [vmem:[%s599 + $0x140] sm:$0xff] %v648
                  %v650 = vld [vmem:[%s598 + $0xc8] sm:$0xff]
                  %651 = vst [vmem:[%s599 + $0x148] sm:$0xff] %v650
                  %v652 = vld [vmem:[%s598 + $0xd0] sm:$0xff]
                  %653 = vst [vmem:[%s599 + $0x150] sm:$0xff] %v652
                  %v654 = vld [vmem:[%s598 + $0xd8] sm:$0xff]
                  %655 = vst [vmem:[%s599 + $0x158] sm:$0xff] %v654
                  %v656 = vld [vmem:[%s598 + $0xe0] sm:$0xff]
                  %657 = vst [vmem:[%s599 + $0x160] sm:$0xff] %v656
                  %v658 = vld [vmem:[%s598 + $0xe8] sm:$0xff]
                  %659 = vst [vmem:[%s599 + $0x168] sm:$0xff] %v658
                  %v660 = vld [vmem:[%s598 + $0xf0] sm:$0xff]
                  %661 = vst [vmem:[%s599 + $0x170] sm:$0xff] %v660
                  %v662 = vld [vmem:[%s598 + $0xf8] sm:$0xff]
                  %663 = vst [vmem:[%s599 + $0x178] sm:$0xff] %v662
                  %v664 = vld [vmem:[%s598 + $0x100] sm:$0xff]
                  %665 = vst [vmem:[%s599 + $0x200] sm:$0xff] %v664
                  %v666 = vld [vmem:[%s598 + $0x108] sm:$0xff]
                  %667 = vst [vmem:[%s599 + $0x208] sm:$0xff] %v666
                  %v668 = vld [vmem:[%s598 + $0x110] sm:$0xff]
                  %669 = vst [vmem:[%s599 + $0x210] sm:$0xff] %v668
                  %v670 = vld [vmem:[%s598 + $0x118] sm:$0xff]
                  %671 = vst [vmem:[%s599 + $0x218] sm:$0xff] %v670
                  %v672 = vld [vmem:[%s598 + $0x120] sm:$0xff]
                  %673 = vst [vmem:[%s599 + $0x220] sm:$0xff] %v672
                  %v674 = vld [vmem:[%s598 + $0x128] sm:$0xff]
                  %675 = vst [vmem:[%s599 + $0x228] sm:$0xff] %v674
                  %v676 = vld [vmem:[%s598 + $0x130] sm:$0xff]
                  %677 = vst [vmem:[%s599 + $0x230] sm:$0xff] %v676
                  %v678 = vld [vmem:[%s598 + $0x138] sm:$0xff]
                  %679 = vst [vmem:[%s599 + $0x238] sm:$0xff] %v678
                  %v680 = vld [vmem:[%s598 + $0x140] sm:$0xff]
                  %681 = vst [vmem:[%s599 + $0x240] sm:$0xff] %v680
                  %v682 = vld [vmem:[%s598 + $0x148] sm:$0xff]
                  %683 = vst [vmem:[%s599 + $0x248] sm:$0xff] %v682
                  %v684 = vld [vmem:[%s598 + $0x150] sm:$0xff]
                  %685 = vst [vmem:[%s599 + $0x250] sm:$0xff] %v684
                  %v686 = vld [vmem:[%s598 + $0x158] sm:$0xff]
                  %687 = vst [vmem:[%s599 + $0x258] sm:$0xff] %v686
                  %v688 = vld [vmem:[%s598 + $0x160] sm:$0xff]
                  %689 = vst [vmem:[%s599 + $0x260] sm:$0xff] %v688
                  %v690 = vld [vmem:[%s598 + $0x168] sm:$0xff]
                  %691 = vst [vmem:[%s599 + $0x268] sm:$0xff] %v690
                  %v692 = vld [vmem:[%s598 + $0x170] sm:$0xff]
                  %693 = vst [vmem:[%s599 + $0x270] sm:$0xff] %v692
                  %v694 = vld [vmem:[%s598 + $0x178] sm:$0xff]
                  %695 = vst [vmem:[%s599 + $0x278] sm:$0xff] %v694
                $region68: #{tpu_custom_call.1} parent=62 // loop_footer
                  %s597 = sadd.s32 1, %s593
                $region69: #{tpu_custom_call.1} parent=62 // loop_footer_branch
                  %592 = sbr.rel target = $region65
                $region70: #{tpu_custom_call.1} parent=62 // loop_exit
                  _
              $region63: #{tpu_custom_call.1} parent=47 // pred_fallthru
                _
              // Predicated region
              $region71: #{tpu_custom_call.1} parent=47 // pred_check
                _
              $region72: #{tpu_custom_call.1} parent=47 // pred_check_branch
                %697 = sbr.rel target = $region74
              $region73: #{tpu_custom_call.1} parent=47 // pred_region
                _
              $region74: #{tpu_custom_call.1} parent=47 // pred_fallthru
                _
            $region48: #{tpu_custom_call.1} parent=43 // pred_fallthru
              _
            // Predicated region
            $region49: #{tpu_custom_call.1} parent=43 // pred_check
              _
            $region50: #{tpu_custom_call.1} parent=43 // pred_check_branch
              %483 = sbr.rel target = $region52
            $region51: #{tpu_custom_call.1} parent=43 // pred_region
              %s485 = ssub.s32 256, 1
              loop: start=0, step=1, limit=1
              $region53: #{tpu_custom_call.1} parent=51 // loop_pre_header
                _
              $region54: #{tpu_custom_call.1} parent=51 // loop_header
                %s487 = sphi 0, %s491
                %p488 = scmp.ge.s32.totalorder %s487, 1
                %s492 = sphi %s469, %s469
                %s493 = sphi %s477, %s477
              $region55: #{tpu_custom_call.1} parent=51 // loop_header_branch
                %490 = sbr.rel (%p488) target = $region59
              $region56: #{tpu_custom_call.1} parent=51 // loop_body
                %v494 = vld [vmem:[%s492] sm:%s485]
                %495 = vst [vmem:[%s493] sm:%s485] %v494
                %v496 = vld [vmem:[%s492 + $0x8] sm:%s485]
                %497 = vst [vmem:[%s493 + $0x8] sm:%s485] %v496
                %v498 = vld [vmem:[%s492 + $0x10] sm:%s485]
                %499 = vst [vmem:[%s493 + $0x10] sm:%s485] %v498
                %v500 = vld [vmem:[%s492 + $0x18] sm:%s485]
                %501 = vst [vmem:[%s493 + $0x18] sm:%s485] %v500
                %v502 = vld [vmem:[%s492 + $0x20] sm:%s485]
                %503 = vst [vmem:[%s493 + $0x20] sm:%s485] %v502
                %v504 = vld [vmem:[%s492 + $0x28] sm:%s485]
                %505 = vst [vmem:[%s493 + $0x28] sm:%s485] %v504
                %v506 = vld [vmem:[%s492 + $0x30] sm:%s485]
                %507 = vst [vmem:[%s493 + $0x30] sm:%s485] %v506
                %v508 = vld [vmem:[%s492 + $0x38] sm:%s485]
                %509 = vst [vmem:[%s493 + $0x38] sm:%s485] %v508
                %v510 = vld [vmem:[%s492 + $0x40] sm:%s485]
                %511 = vst [vmem:[%s493 + $0x40] sm:%s485] %v510
                %v512 = vld [vmem:[%s492 + $0x48] sm:%s485]
                %513 = vst [vmem:[%s493 + $0x48] sm:%s485] %v512
                %v514 = vld [vmem:[%s492 + $0x50] sm:%s485]
                %515 = vst [vmem:[%s493 + $0x50] sm:%s485] %v514
                %v516 = vld [vmem:[%s492 + $0x58] sm:%s485]
                %517 = vst [vmem:[%s493 + $0x58] sm:%s485] %v516
                %v518 = vld [vmem:[%s492 + $0x60] sm:%s485]
                %519 = vst [vmem:[%s493 + $0x60] sm:%s485] %v518
                %v520 = vld [vmem:[%s492 + $0x68] sm:%s485]
                %521 = vst [vmem:[%s493 + $0x68] sm:%s485] %v520
                %v522 = vld [vmem:[%s492 + $0x70] sm:%s485]
                %523 = vst [vmem:[%s493 + $0x70] sm:%s485] %v522
                %v524 = vld [vmem:[%s492 + $0x78] sm:%s485]
                %525 = vst [vmem:[%s493 + $0x78] sm:%s485] %v524
                %v526 = vld [vmem:[%s492 + $0x80] sm:%s485]
                %527 = vst [vmem:[%s493 + $0x100] sm:%s485] %v526
                %v528 = vld [vmem:[%s492 + $0x88] sm:%s485]
                %529 = vst [vmem:[%s493 + $0x108] sm:%s485] %v528
                %v530 = vld [vmem:[%s492 + $0x90] sm:%s485]
                %531 = vst [vmem:[%s493 + $0x110] sm:%s485] %v530
                %v532 = vld [vmem:[%s492 + $0x98] sm:%s485]
                %533 = vst [vmem:[%s493 + $0x118] sm:%s485] %v532
                %v534 = vld [vmem:[%s492 + $0xa0] sm:%s485]
                %535 = vst [vmem:[%s493 + $0x120] sm:%s485] %v534
                %v536 = vld [vmem:[%s492 + $0xa8] sm:%s485]
                %537 = vst [vmem:[%s493 + $0x128] sm:%s485] %v536
                %v538 = vld [vmem:[%s492 + $0xb0] sm:%s485]
                %539 = vst [vmem:[%s493 + $0x130] sm:%s485] %v538
                %v540 = vld [vmem:[%s492 + $0xb8] sm:%s485]
                %541 = vst [vmem:[%s493 + $0x138] sm:%s485] %v540
                %v542 = vld [vmem:[%s492 + $0xc0] sm:%s485]
                %543 = vst [vmem:[%s493 + $0x140] sm:%s485] %v542
                %v544 = vld [vmem:[%s492 + $0xc8] sm:%s485]
                %545 = vst [vmem:[%s493 + $0x148] sm:%s485] %v544
                %v546 = vld [vmem:[%s492 + $0xd0] sm:%s485]
                %547 = vst [vmem:[%s493 + $0x150] sm:%s485] %v546
                %v548 = vld [vmem:[%s492 + $0xd8] sm:%s485]
                %549 = vst [vmem:[%s493 + $0x158] sm:%s485] %v548
                %v550 = vld [vmem:[%s492 + $0xe0] sm:%s485]
                %551 = vst [vmem:[%s493 + $0x160] sm:%s485] %v550
                %v552 = vld [vmem:[%s492 + $0xe8] sm:%s485]
                %553 = vst [vmem:[%s493 + $0x168] sm:%s485] %v552
                %v554 = vld [vmem:[%s492 + $0xf0] sm:%s485]
                %555 = vst [vmem:[%s493 + $0x170] sm:%s485] %v554
                %v556 = vld [vmem:[%s492 + $0xf8] sm:%s485]
                %557 = vst [vmem:[%s493 + $0x178] sm:%s485] %v556
                %v558 = vld [vmem:[%s492 + $0x100] sm:%s485]
                %559 = vst [vmem:[%s493 + $0x200] sm:%s485] %v558
                %v560 = vld [vmem:[%s492 + $0x108] sm:%s485]
                %561 = vst [vmem:[%s493 + $0x208] sm:%s485] %v560
                %v562 = vld [vmem:[%s492 + $0x110] sm:%s485]
                %563 = vst [vmem:[%s493 + $0x210] sm:%s485] %v562
                %v564 = vld [vmem:[%s492 + $0x118] sm:%s485]
                %565 = vst [vmem:[%s493 + $0x218] sm:%s485] %v564
                %v566 = vld [vmem:[%s492 + $0x120] sm:%s485]
                %567 = vst [vmem:[%s493 + $0x220] sm:%s485] %v566
                %v568 = vld [vmem:[%s492 + $0x128] sm:%s485]
                %569 = vst [vmem:[%s493 + $0x228] sm:%s485] %v568
                %v570 = vld [vmem:[%s492 + $0x130] sm:%s485]
                %571 = vst [vmem:[%s493 + $0x230] sm:%s485] %v570
                %v572 = vld [vmem:[%s492 + $0x138] sm:%s485]
                %573 = vst [vmem:[%s493 + $0x238] sm:%s485] %v572
                %v574 = vld [vmem:[%s492 + $0x140] sm:%s485]
                %575 = vst [vmem:[%s493 + $0x240] sm:%s485] %v574
                %v576 = vld [vmem:[%s492 + $0x148] sm:%s485]
                %577 = vst [vmem:[%s493 + $0x248] sm:%s485] %v576
                %v578 = vld [vmem:[%s492 + $0x150] sm:%s485]
                %579 = vst [vmem:[%s493 + $0x250] sm:%s485] %v578
                %v580 = vld [vmem:[%s492 + $0x158] sm:%s485]
                %581 = vst [vmem:[%s493 + $0x258] sm:%s485] %v580
                %v582 = vld [vmem:[%s492 + $0x160] sm:%s485]
                %583 = vst [vmem:[%s493 + $0x260] sm:%s485] %v582
                %v584 = vld [vmem:[%s492 + $0x168] sm:%s485]
                %585 = vst [vmem:[%s493 + $0x268] sm:%s485] %v584
                %v586 = vld [vmem:[%s492 + $0x170] sm:%s485]
                %587 = vst [vmem:[%s493 + $0x270] sm:%s485] %v586
                %v588 = vld [vmem:[%s492 + $0x178] sm:%s485]
                %589 = vst [vmem:[%s493 + $0x278] sm:%s485] %v588
              $region57: #{tpu_custom_call.1} parent=51 // loop_footer
                %s491 = sadd.s32 1, %s487
              $region58: #{tpu_custom_call.1} parent=51 // loop_footer_branch
                %486 = sbr.rel target = $region54
              $region59: #{tpu_custom_call.1} parent=51 // loop_exit
                _
            $region52: #{tpu_custom_call.1} parent=43 // pred_fallthru
              _
          $region44: #{tpu_custom_call.1} parent=39 // pred_fallthru
            _
          %698 = vnop
        $region40: #{tpu_custom_call.1} parent=31 // pred_fallthru
          _
      $region32: #{tpu_custom_call.1} parent=5 // pred_fallthru
        _
      %p699 = scmp.le.s32.totalorder 2, %s12
      // Predicated region
      $region75: #{tpu_custom_call.1} parent=5 // pred_check
        %p700 = pneg %p699
      $region76: #{tpu_custom_call.1} parent=5 // pred_check_branch
        %702 = sbr.rel (%p700) target = $region78
      $region77: #{tpu_custom_call.1} parent=5 // pred_region
        %s703 = ssub.s32 %s12, 2
        // Predicated region
        $region79: #{tpu_custom_call.1} parent=77 // pred_check
          %p704 = pneg %p130
        $region80: #{tpu_custom_call.1} parent=77 // pred_check_branch
          %706 = sbr.rel (%p704) target = $region82
        $region81: #{tpu_custom_call.1} parent=77 // pred_region
          %s707 = sand.u32 %s115, 1
          %s708 = sand.u32 %s115, 1
          %s709 = smul.addr %s708, 384
          %s710 = scalar_lea.vmem [#allocation4], %s709
        $region82: #{tpu_custom_call.1} parent=77 // pred_fallthru
          _
      $region78: #{tpu_custom_call.1} parent=5 // pred_fallthru
        _
    $region6: #{tpu_custom_call.1} parent=1 // loop_footer
      %s16 = sadd.s32 1, %s12
    $region7: #{tpu_custom_call.1} parent=1 // loop_footer_branch
      %11 = sbr.rel target = $region3
    $region8: #{tpu_custom_call.1} parent=1 // loop_exit
      _
    %711 = vsyncpa [#allocation3], 1
    %s712 = scalar_lea.sflag [#allocation3], 1
    %713 = vsyncpa %s712, 1

</llo_original>
